<compile_context>
chip_gen: v6e
topology: v6e:2x2x1
jax: 0.10.0
libtpu: 0.0.40
codegen_flags: <defaults>
</compile_context>

<pallas_src>
import jax
import jax.numpy as jnp
import numpy as np
from jax.experimental import pallas as pl
from jax.experimental.pallas import tpu as pltpu

K = 3  # local kernel size (fixed by the GuideConv op)
_MIB = 1024 * 1024


# ----------------------------------------------------------------------------
# Kernels
# ----------------------------------------------------------------------------
def _conv2d_local_fused_kernel(x_ref, w_ref, o_ref):
    # x_ref: (tc, H, W)   input channel tile (unpadded)
    # w_ref: (tc, 3, 3, H, W) per-pixel weights, all 9 taps for this tile
    # o_ref: (tc, H, W)
    tc, n_h, n_w = x_ref.shape
    f32 = jnp.float32
    x = x_ref[...].astype(f32)

    # Edge masks (computed once per grid step, amortized over all 9 taps).
    col = jax.lax.broadcasted_iota(jnp.int32, (1, n_h, n_w), 2)
    row = jax.lax.broadcasted_iota(jnp.int32, (1, n_h, n_w), 1)
    has_left = (col >= 1).astype(f32)        # tap j=0 reads w-1
    has_right = (col <= n_w - 2).astype(f32)  # tap j=2 reads w+1
    has_up = (row >= 1).astype(f32)           # tap i=0 reads h-1
    has_down = (row <= n_h - 2).astype(f32)   # tap i=2 reads h+1

    acc = None
    for i in range(K):
        # Row tap: element at output row h comes from input row h + i - 1.
        if i == 0:
            xi = pltpu.roll(x, 1, axis=1) * has_up         # x[h-1, w]
        elif i == 1:
            xi = x                                          # x[h,   w]
        else:
            xi = pltpu.roll(x, n_h - 1, axis=1) * has_down  # x[h+1, w]
        # Column taps: lane rotation + border-column zeroing.
        taps = (
            pltpu.roll(xi, 1, axis=2) * has_left,           # x[., w-1]
            xi,                                             # x[., w  ]
            pltpu.roll(xi, n_w - 1, axis=2) * has_right,    # x[., w+1]
        )
        for j in range(K):
            c = taps[j] * w_ref[:, i, j].astype(f32)
            acc = c if acc is None else acc + c

    o_ref[...] = acc.astype(o_ref.dtype)


def _make_rowtap_kernel(acc_in_out):
    """Fallback: 3-step reduction over the row tap i = program_id(2).

    acc_in_out=True  -> output dtype is f32; accumulate directly into the
                        resident o_ref block (no scratch, no final copy/cast).
    acc_in_out=False -> accumulate into an f32 VMEM scratch, cast at the end.
    """

    def kernel(x_ref, w_ref, o_ref, *scratch):
        # x_ref: (tc, H+2, W) H-zero-padded input, resident across i
        # w_ref: (tc, 3, H, W) the 3 column taps of row tap i
        acc_ref = o_ref if acc_in_out else scratch[0]
        tc, h_pad, n_w = x_ref.shape
        n_h = h_pad - 2
        i = pl.program_id(2)

        # Rows [i, i+H) of the padded input == input rows (out_row + i - 1).
        x = x_ref[:, pl.ds(i, n_h), :].astype(jnp.float32)

        col = jax.lax.broadcasted_iota(jnp.int32, (1, n_h, n_w), 2)
        has_left = (col >= 1).astype(jnp.float32)
        has_right = (col <= n_w - 2).astype(jnp.float32)

        contrib = (pltpu.roll(x, 1, axis=2) * has_left) * w_ref[:, 0].astype(jnp.float32)
        contrib = contrib + x * w_ref[:, 1].astype(jnp.float32)
        contrib = contrib + (pltpu.roll(x, n_w - 1, axis=2) * has_right) \
            * w_ref[:, 2].astype(jnp.float32)

        @pl.when(i == 0)
        def _():
            acc_ref[...] = contrib

        @pl.when(i > 0)
        def _():
            acc_ref[...] += contrib

        if not acc_in_out:
            @pl.when(i == pl.num_programs(2) - 1)
            def _():
                o_ref[...] = acc_ref[...].astype(o_ref.dtype)

    return kernel


# ----------------------------------------------------------------------------
# Tiling / VMEM budgeting
# ----------------------------------------------------------------------------
def _vmem_budgets():
    """Returns (total pipeline footprint budget, cap on vmem_limit_bytes)."""
    cap = None
    try:
        cap = getattr(pltpu.get_tpu_info(), "vmem_capacity_bytes", None)
    except Exception:
        cap = None
    if cap and int(cap) >= 100 * _MIB:
        # v5e / v6e class parts (128 MiB VMEM per core): bigger tiles pay off.
        return 48 * _MIB, 96 * _MIB
    # Conservative default sized for v7x's 64 MiB per-core VMEM.
    return 26 * _MIB, 48 * _MIB


def _select_tiling(B, C, H, W, x_item, w_item, o_item, budget,
                   channel_tile=None, force_mode=None):
    """Pick (mode, channel tile, estimated VMEM footprint)."""
    hw = H * W
    fp = {
        # double-buffered weight/input/output blocks + ~5 f32 compiler temps
        "fused": lambda tc: tc * hw * (2 * (K * K * w_item + x_item + o_item) + 5 * 4),
        # 3-tap weight block x2, output x2, f32 acc, ~4 f32 temps, padded input x2
        "rowtap": lambda tc: (tc * hw * (2 * (K * w_item + o_item) + 4 + 4 * 4)
                              + 2 * tc * (H + 2) * W * x_item),
    }
    divisors = sorted((d for d in range(1, C + 1) if C % d == 0), reverse=True)

    def allowed(tc):
        # Only force >= 2 channel tiles when batch alone cannot feed two
        # TensorCores (v7x megacore); on 1-TC parts splitting just adds steps.
        return not (B == 1 and C >= 2 and tc == C)

    def best_tc(mode):
        cands = [channel_tile] if channel_tile is not None else divisors
        for tc in cands:
            if (channel_tile is not None or allowed(tc)) and fp[mode](tc) <= budget:
                return tc
        return None

    for mode in ([force_mode] if force_mode else ["fused", "rowtap"]):
        tc = best_tc(mode)
        if tc is not None:
            return mode, tc, fp[mode](tc)

    # TODO(synk): add H (row-block) tiling with halo handling for feature maps
    # so large that even a single-channel 3-tap block overflows the budget.
    mode = force_mode or "rowtap"
    tc = channel_tile or 1
    return mode, tc, fp[mode](tc)


# ----------------------------------------------------------------------------
# Wrapper
# ----------------------------------------------------------------------------
def conv2d_local(inp, weight, *, channel_tile=None, force_mode=None):
    """inp: (B, C, H, W); weight: (B, C*9, H, W). f32 or bf16 (f32 accumulate)."""
    B, C, H, W = inp.shape
    assert weight.shape == (B, C * K * K, H, W), weight.shape
    # NOTE: output stores are lane-dense (fastest) when W % 128 == 0; other
    # widths still work but pay masked partial stores on the output path.

    # Metadata-only reshape (no HBM pass): channel c*9 + i*3 + j -> [c, i, j].
    w6 = weight.reshape(B, C, K, K, H, W)

    x_item = jnp.dtype(inp.dtype).itemsize
    w_item = jnp.dtype(weight.dtype).itemsize
    o_item = x_item

    budget, limit_cap = _vmem_budgets()
    mode, tc, footprint = _select_tiling(B, C, H, W, x_item, w_item, o_item,
                                         budget, channel_tile, force_mode)
    assert C % tc == 0, (C, tc)
    vmem_limit = int(min(max(footprint + 16 * _MIB, 32 * _MIB), limit_cap))

    if mode == "fused":
        return pl.pallas_call(
            _conv2d_local_fused_kernel,
            out_shape=jax.ShapeDtypeStruct((B, C, H, W), inp.dtype),
            grid=(B, C // tc),
            in_specs=[
                pl.BlockSpec((None, tc, H, W), lambda b, c: (b, c, 0, 0)),
                pl.BlockSpec((None, tc, K, K, H, W),
                             lambda b, c: (b, c, 0, 0, 0, 0)),
            ],
            out_specs=pl.BlockSpec((None, tc, H, W), lambda b, c: (b, c, 0, 0)),
            compiler_params=pltpu.CompilerParams(
                dimension_semantics=("parallel", "parallel"),
                vmem_limit_bytes=vmem_limit),
        )(inp, w6)

    # Fallback: 3-step row-tap reduction.  Only the H borders are padded
    # (kept lane-dense); the input slab stays resident across the i axis.
    acc_in_out = jnp.dtype(inp.dtype) == jnp.dtype(jnp.float32)
    xpad = jnp.pad(inp, ((0, 0), (0, 0), (1, 1), (0, 0)))
    return pl.pallas_call(
        _make_rowtap_kernel(acc_in_out),
        out_shape=jax.ShapeDtypeStruct((B, C, H, W), inp.dtype),
        grid=(B, C // tc, K),
        in_specs=[
            pl.BlockSpec((None, tc, H + 2, W), lambda b, c, i: (b, c, 0, 0)),
            pl.BlockSpec((None, tc, None, K, H, W),
                         lambda b, c, i: (b, c, i, 0, 0, 0)),
        ],
        out_specs=pl.BlockSpec((None, tc, H, W), lambda b, c, i: (b, c, 0, 0)),
        scratch_shapes=([] if acc_in_out
                        else [pltpu.VMEM((tc, H, W), jnp.float32)]),
        compiler_params=pltpu.CompilerParams(
            dimension_semantics=("parallel", "parallel", "arbitrary"),
            vmem_limit_bytes=vmem_limit),
    )(xpad, w6)


# ----------------------------------------------------------------------------
# Reference & test
# ----------------------------------------------------------------------------
def _reference(inp, weight):
    """Plain-JAX reference for correctness checking."""
    B, C, H, W = inp.shape
    xpad = jnp.pad(inp, ((0, 0), (0, 0), (1, 1), (1, 1)))
    w = weight.reshape(B, C, K, K, H, W)
    out = jnp.zeros((B, C, H, W), jnp.float32)
    for i in range(K):
        for j in range(K):
            out = out + (xpad[:, :, i:i + H, j:j + W].astype(jnp.float32)
                         * w[:, :, i, j].astype(jnp.float32))
    return out.astype(inp.dtype)


def _tolerance(dtype):
    return 3e-2 if jnp.dtype(dtype) == jnp.dtype(jnp.bfloat16) else 1e-4


if __name__ == "__main__":
    # Small shapes; W = 128 keeps the output last dim lane-dense (native width).
    B, C, H, W = 2, 4, 16, 128
    key = jax.random.PRNGKey(0)
    k_in, k_w = jax.random.split(key)

    x = jax.random.normal(k_in, (B, C, H, W), dtype=jnp.float32)
    # Conv2dLocal has no learned parameters; the local weights are a second
    # input produced elsewhere in MFFNet.  Build them deterministically.
    w = jax.random.normal(k_w, (B, C * K * K, H, W), dtype=jnp.float32)

    ref = _reference(x, w)

    # Primary (fused single-step) path.
    out = jax.block_until_ready(conv2d_local(x, w))
    assert out.shape == (B, C, H, W)
    err = float(np.max(np.abs(np.asarray(out) - np.asarray(ref))))
    assert err < _tolerance(x.dtype), err

    # Fallback (3-step row-tap) path, exercised explicitly for coverage.
    out_rt = jax.block_until_ready(conv2d_local(x, w, force_mode="rowtap"))
    err_rt = float(np.max(np.abs(np.asarray(out_rt) - np.asarray(ref))))
    assert err_rt < _tolerance(x.dtype), err_rt

    print("KERNEL_OK")
</pallas_src>

<mosaic_0001>
module attributes {stable_mosaic.version = 11 : i64} {
  func.func @_conv2d_local_fused_kernel(%arg0: i32, %arg1: i32, %arg2: memref<1x4x16x128xf32, #tpu.memory_space<vmem>>, %arg3: memref<1x4x3x3x16x128xf32, #tpu.memory_space<vmem>>, %arg4: memref<1x4x16x128xf32, #tpu.memory_space<vmem>>) attributes {dimension_semantics = [#tpu.dimension_semantics<parallel>, #tpu.dimension_semantics<parallel>], iteration_bounds = array<i64: 2, 1>, scalar_prefetch = 0 : i64, scratch_operands = 0 : i64, tpu.core_type = #tpu.core_type<tc>, window_params = [{transform_indices = @transform_0, window_bounds = array<i64: 1, 4, 16, 128>}, {transform_indices = @transform_1, window_bounds = array<i64: 1, 4, 3, 3, 16, 128>}, {transform_indices = @transform_2, window_bounds = array<i64: 1, 4, 16, 128>}]} {
    %c0 = arith.constant 0 : index
    %c0_0 = arith.constant 0 : index
    %c0_1 = arith.constant 0 : index
    %c0_2 = arith.constant 0 : index
    %0 = vector.load %arg2[%c0, %c0_0, %c0_1, %c0_2] : memref<1x4x16x128xf32, #tpu.memory_space<vmem>>, vector<1x4x16x128xf32>
    %1 = vector.shape_cast %0 : vector<1x4x16x128xf32> to vector<4x16x128xf32>
    %2 = tpu.iota {dimensions = array<i32: 2>} : vector<1x16x128xi32>
    %3 = tpu.iota {dimensions = array<i32: 1>} : vector<1x16x128xi32>
    %c1_i32 = arith.constant 1 : i32
    %4 = vector.broadcast %c1_i32 : i32 to vector<1x16x128xi32>
    %5 = arith.cmpi sge, %2, %4 : vector<1x16x128xi32>
    %6 = arith.extui %5 : vector<1x16x128xi1> to vector<1x16x128xi32>
    %7 = arith.sitofp %6 : vector<1x16x128xi32> to vector<1x16x128xf32>
    %c126_i32 = arith.constant 126 : i32
    %8 = vector.broadcast %c126_i32 : i32 to vector<1x16x128xi32>
    %9 = arith.cmpi sle, %2, %8 : vector<1x16x128xi32>
    %10 = arith.extui %9 : vector<1x16x128xi1> to vector<1x16x128xi32>
    %11 = arith.sitofp %10 : vector<1x16x128xi32> to vector<1x16x128xf32>
    %c1_i32_3 = arith.constant 1 : i32
    %12 = vector.broadcast %c1_i32_3 : i32 to vector<1x16x128xi32>
    %13 = arith.cmpi sge, %3, %12 : vector<1x16x128xi32>
    %14 = arith.extui %13 : vector<1x16x128xi1> to vector<1x16x128xi32>
    %15 = arith.sitofp %14 : vector<1x16x128xi32> to vector<1x16x128xf32>
    %c14_i32 = arith.constant 14 : i32
    %16 = vector.broadcast %c14_i32 : i32 to vector<1x16x128xi32>
    %17 = arith.cmpi sle, %3, %16 : vector<1x16x128xi32>
    %18 = arith.extui %17 : vector<1x16x128xi1> to vector<1x16x128xi32>
    %19 = arith.sitofp %18 : vector<1x16x128xi32> to vector<1x16x128xf32>
    %c1_i32_4 = arith.constant 1 : i32
    %20 = tpu.dynamic_rotate %1 by %c1_i32_4 dim 1 : vector<4x16x128xf32>, i32 -> vector<4x16x128xf32>
    %21 = vector.broadcast %15 : vector<1x16x128xf32> to vector<4x16x128xf32>
    %22 = arith.mulf %20, %21 : vector<4x16x128xf32>
    %c1_i32_5 = arith.constant 1 : i32
    %23 = tpu.dynamic_rotate %22 by %c1_i32_5 dim 2 : vector<4x16x128xf32>, i32 -> vector<4x16x128xf32>
    %24 = vector.broadcast %7 : vector<1x16x128xf32> to vector<4x16x128xf32>
    %25 = arith.mulf %23, %24 : vector<4x16x128xf32>
    %c127_i32 = arith.constant 127 : i32
    %26 = tpu.dynamic_rotate %22 by %c127_i32 dim 2 : vector<4x16x128xf32>, i32 -> vector<4x16x128xf32>
    %27 = vector.broadcast %11 : vector<1x16x128xf32> to vector<4x16x128xf32>
    %28 = arith.mulf %26, %27 : vector<4x16x128xf32>
    %c0_6 = arith.constant 0 : index
    %c0_7 = arith.constant 0 : index
    %c0_8 = arith.constant 0 : index
    %c0_9 = arith.constant 0 : index
    %c0_10 = arith.constant 0 : index
    %c0_11 = arith.constant 0 : index
    %29 = vector.load %arg3[%c0_6, %c0_7, %c0_8, %c0_9, %c0_10, %c0_11] : memref<1x4x3x3x16x128xf32, #tpu.memory_space<vmem>>, vector<1x4x1x1x16x128xf32>
    %30 = vector.shape_cast %29 : vector<1x4x1x1x16x128xf32> to vector<4x16x128xf32>
    %31 = arith.mulf %25, %30 : vector<4x16x128xf32>
    %c0_12 = arith.constant 0 : index
    %c0_13 = arith.constant 0 : index
    %c0_14 = arith.constant 0 : index
    %c1 = arith.constant 1 : index
    %c0_15 = arith.constant 0 : index
    %c0_16 = arith.constant 0 : index
    %32 = vector.load %arg3[%c0_12, %c0_13, %c0_14, %c1, %c0_15, %c0_16] : memref<1x4x3x3x16x128xf32, #tpu.memory_space<vmem>>, vector<1x4x1x1x16x128xf32>
    %33 = vector.shape_cast %32 : vector<1x4x1x1x16x128xf32> to vector<4x16x128xf32>
    %34 = arith.mulf %22, %33 : vector<4x16x128xf32>
    %35 = arith.addf %31, %34 : vector<4x16x128xf32>
    %c0_17 = arith.constant 0 : index
    %c0_18 = arith.constant 0 : index
    %c0_19 = arith.constant 0 : index
    %c2 = arith.constant 2 : index
    %c0_20 = arith.constant 0 : index
    %c0_21 = arith.constant 0 : index
    %36 = vector.load %arg3[%c0_17, %c0_18, %c0_19, %c2, %c0_20, %c0_21] : memref<1x4x3x3x16x128xf32, #tpu.memory_space<vmem>>, vector<1x4x1x1x16x128xf32>
    %37 = vector.shape_cast %36 : vector<1x4x1x1x16x128xf32> to vector<4x16x128xf32>
    %38 = arith.mulf %28, %37 : vector<4x16x128xf32>
    %39 = arith.addf %35, %38 : vector<4x16x128xf32>
    %c1_i32_22 = arith.constant 1 : i32
    %40 = tpu.dynamic_rotate %1 by %c1_i32_22 dim 2 : vector<4x16x128xf32>, i32 -> vector<4x16x128xf32>
    %41 = vector.broadcast %7 : vector<1x16x128xf32> to vector<4x16x128xf32>
    %42 = arith.mulf %40, %41 : vector<4x16x128xf32>
    %c127_i32_23 = arith.constant 127 : i32
    %43 = tpu.dynamic_rotate %1 by %c127_i32_23 dim 2 : vector<4x16x128xf32>, i32 -> vector<4x16x128xf32>
    %44 = vector.broadcast %11 : vector<1x16x128xf32> to vector<4x16x128xf32>
    %45 = arith.mulf %43, %44 : vector<4x16x128xf32>
    %c0_24 = arith.constant 0 : index
    %c0_25 = arith.constant 0 : index
    %c1_26 = arith.constant 1 : index
    %c0_27 = arith.constant 0 : index
    %c0_28 = arith.constant 0 : index
    %c0_29 = arith.constant 0 : index
    %46 = vector.load %arg3[%c0_24, %c0_25, %c1_26, %c0_27, %c0_28, %c0_29] : memref<1x4x3x3x16x128xf32, #tpu.memory_space<vmem>>, vector<1x4x1x1x16x128xf32>
    %47 = vector.shape_cast %46 : vector<1x4x1x1x16x128xf32> to vector<4x16x128xf32>
    %48 = arith.mulf %42, %47 : vector<4x16x128xf32>
    %49 = arith.addf %39, %48 : vector<4x16x128xf32>
    %c0_30 = arith.constant 0 : index
    %c0_31 = arith.constant 0 : index
    %c1_32 = arith.constant 1 : index
    %c1_33 = arith.constant 1 : index
    %c0_34 = arith.constant 0 : index
    %c0_35 = arith.constant 0 : index
    %50 = vector.load %arg3[%c0_30, %c0_31, %c1_32, %c1_33, %c0_34, %c0_35] : memref<1x4x3x3x16x128xf32, #tpu.memory_space<vmem>>, vector<1x4x1x1x16x128xf32>
    %51 = vector.shape_cast %50 : vector<1x4x1x1x16x128xf32> to vector<4x16x128xf32>
    %52 = arith.mulf %1, %51 : vector<4x16x128xf32>
    %53 = arith.addf %49, %52 : vector<4x16x128xf32>
    %c0_36 = arith.constant 0 : index
    %c0_37 = arith.constant 0 : index
    %c1_38 = arith.constant 1 : index
    %c2_39 = arith.constant 2 : index
    %c0_40 = arith.constant 0 : index
    %c0_41 = arith.constant 0 : index
    %54 = vector.load %arg3[%c0_36, %c0_37, %c1_38, %c2_39, %c0_40, %c0_41] : memref<1x4x3x3x16x128xf32, #tpu.memory_space<vmem>>, vector<1x4x1x1x16x128xf32>
    %55 = vector.shape_cast %54 : vector<1x4x1x1x16x128xf32> to vector<4x16x128xf32>
    %56 = arith.mulf %45, %55 : vector<4x16x128xf32>
    %57 = arith.addf %53, %56 : vector<4x16x128xf32>
    %c15_i32 = arith.constant 15 : i32
    %58 = tpu.dynamic_rotate %1 by %c15_i32 dim 1 : vector<4x16x128xf32>, i32 -> vector<4x16x128xf32>
    %59 = vector.broadcast %19 : vector<1x16x128xf32> to vector<4x16x128xf32>
    %60 = arith.mulf %58, %59 : vector<4x16x128xf32>
    %c1_i32_42 = arith.constant 1 : i32
    %61 = tpu.dynamic_rotate %60 by %c1_i32_42 dim 2 : vector<4x16x128xf32>, i32 -> vector<4x16x128xf32>
    %62 = vector.broadcast %7 : vector<1x16x128xf32> to vector<4x16x128xf32>
    %63 = arith.mulf %61, %62 : vector<4x16x128xf32>
    %c127_i32_43 = arith.constant 127 : i32
    %64 = tpu.dynamic_rotate %60 by %c127_i32_43 dim 2 : vector<4x16x128xf32>, i32 -> vector<4x16x128xf32>
    %65 = vector.broadcast %11 : vector<1x16x128xf32> to vector<4x16x128xf32>
    %66 = arith.mulf %64, %65 : vector<4x16x128xf32>
    %c0_44 = arith.constant 0 : index
    %c0_45 = arith.constant 0 : index
    %c2_46 = arith.constant 2 : index
    %c0_47 = arith.constant 0 : index
    %c0_48 = arith.constant 0 : index
    %c0_49 = arith.constant 0 : index
    %67 = vector.load %arg3[%c0_44, %c0_45, %c2_46, %c0_47, %c0_48, %c0_49] : memref<1x4x3x3x16x128xf32, #tpu.memory_space<vmem>>, vector<1x4x1x1x16x128xf32>
    %68 = vector.shape_cast %67 : vector<1x4x1x1x16x128xf32> to vector<4x16x128xf32>
    %69 = arith.mulf %63, %68 : vector<4x16x128xf32>
    %70 = arith.addf %57, %69 : vector<4x16x128xf32>
    %c0_50 = arith.constant 0 : index
    %c0_51 = arith.constant 0 : index
    %c2_52 = arith.constant 2 : index
    %c1_53 = arith.constant 1 : index
    %c0_54 = arith.constant 0 : index
    %c0_55 = arith.constant 0 : index
    %71 = vector.load %arg3[%c0_50, %c0_51, %c2_52, %c1_53, %c0_54, %c0_55] : memref<1x4x3x3x16x128xf32, #tpu.memory_space<vmem>>, vector<1x4x1x1x16x128xf32>
    %72 = vector.shape_cast %71 : vector<1x4x1x1x16x128xf32> to vector<4x16x128xf32>
    %73 = arith.mulf %60, %72 : vector<4x16x128xf32>
    %74 = arith.addf %70, %73 : vector<4x16x128xf32>
    %c0_56 = arith.constant 0 : index
    %c0_57 = arith.constant 0 : index
    %c2_58 = arith.constant 2 : index
    %c2_59 = arith.constant 2 : index
    %c0_60 = arith.constant 0 : index
    %c0_61 = arith.constant 0 : index
    %75 = vector.load %arg3[%c0_56, %c0_57, %c2_58, %c2_59, %c0_60, %c0_61] : memref<1x4x3x3x16x128xf32, #tpu.memory_space<vmem>>, vector<1x4x1x1x16x128xf32>
    %76 = vector.shape_cast %75 : vector<1x4x1x1x16x128xf32> to vector<4x16x128xf32>
    %77 = arith.mulf %66, %76 : vector<4x16x128xf32>
    %78 = arith.addf %74, %77 : vector<4x16x128xf32>
    %c0_62 = arith.constant 0 : index
    %c0_63 = arith.constant 0 : index
    %c0_64 = arith.constant 0 : index
    %c0_65 = arith.constant 0 : index
    %79 = vector.load %arg4[%c0_62, %c0_63, %c0_64, %c0_65] : memref<1x4x16x128xf32, #tpu.memory_space<vmem>>, vector<1x4x16x128xf32>
    %80 = vector.shape_cast %79 : vector<1x4x16x128xf32> to vector<4x16x128xf32>
    %81 = vector.shape_cast %78 : vector<4x16x128xf32> to vector<1x4x16x128xf32>
    tpu.vector_store %arg4[%c0_62, %c0_63, %c0_64, %c0_65], %81 {strides = array<i32>} : memref<1x4x16x128xf32, #tpu.memory_space<vmem>>, vector<1x4x16x128xf32>,
    return
  }
  func.func @transform_0(%arg0: i32, %arg1: i32) -> (i32, i32, i32, i32) {
    %c0_i32 = arith.constant 0 : i32
    %c0_i32_0 = arith.constant 0 : i32
    %c0_i32_1 = arith.constant 0 : i32
    return %arg0, %arg1, %c0_i32, %c0_i32_0 : i32, i32, i32, i32
  }
  func.func @transform_1(%arg0: i32, %arg1: i32) -> (i32, i32, i32, i32, i32, i32) {
    %c0_i32 = arith.constant 0 : i32
    %c0_i32_0 = arith.constant 0 : i32
    %c0_i32_1 = arith.constant 0 : i32
    %c0_i32_2 = arith.constant 0 : i32
    %c0_i32_3 = arith.constant 0 : i32
    return %arg0, %arg1, %c0_i32, %c0_i32_0, %c0_i32_1, %c0_i32_2 : i32, i32, i32, i32, i32, i32
  }
  func.func @transform_2(%arg0: i32, %arg1: i32) -> (i32, i32, i32, i32) {
    %c0_i32 = arith.constant 0 : i32
    %c0_i32_0 = arith.constant 0 : i32
    %c0_i32_1 = arith.constant 0 : i32
    return %arg0, %arg1, %c0_i32, %c0_i32_0 : i32, i32, i32, i32
  }
}

</mosaic_0001>

<llo_original>
// kernel: tpu_custom_call.1
$region0: #{tpu_custom_call.1}
  #allocation0 [shape = 'u32[]', space=smem, size = 0x4, offset = 0x4, fixed_abs, tag = 'smem constant byte address 0x4 - core index']
  #allocation1 [shape = 'u32[144,128]{1,0:T(1,128)}', space=vmem, size = 0x12000, scoped, tag = 'internal scratch']
  %s0 = inlined_call_operand.hbm [shape: f32[2,4,16,128], index: 0, kind: input, shape index: {}]
  %s1 = inlined_call_operand.hbm [shape: f32[2,4,3,3,16,128], index: 1, kind: input, shape index: {}]
  %s2 = inlined_call_operand.hbm [shape: f32[2,4,16,128], index: 2, kind: output, shape index: {}]
  %s3 = sld [smem:[#allocation0]]
  $region49: #{tpu_custom_call.1} parent=0
    _
  %s5 = ssub.s32 1, %s3
  %s6 = scalar_select 0, %s5, %s3
  $region1: #{tpu_custom_call.1} parent=0
    #allocation2 [shape = 'u8[65536]{0}', space=vmem, size = 0x10000, scoped, tag = 'input window, operand 0']
    #allocation3 [shape = 's32[2]{0}', space=sflag, size = 0x8, scoped, tag = 'scoped memory for tpu_custom_call.1']
    #allocation4 [shape = 's32[2]{0}', space=sflag, size = 0x8, scoped, tag = 'scoped memory for tpu_custom_call.1']
    #allocation5 [shape = 'u8[589824]{0}', space=vmem, size = 0x90000, scoped, tag = 'input window, operand 1']
    #allocation6 [shape = 's32[2]{0}', space=sflag, size = 0x8, scoped, tag = 'scoped memory for tpu_custom_call.1']
    #allocation7 [shape = 'u8[65536]{0}', space=vmem, size = 0x10000, scoped, tag = 'output window, operand 0']
    %7 = vsyncpa [#allocation3], 0
    %s8 = scalar_lea.sflag [#allocation3], 1
    %9 = vsyncpa %s8, 0
    %10 = vsyncpa [#allocation6], 0
    %s11 = scalar_lea.sflag [#allocation6], 1
    %12 = vsyncpa %s11, 0
    %13 = vsyncpa [#allocation4], 0
    %s14 = scalar_lea.sflag [#allocation4], 1
    %15 = vsyncpa %s14, 0
    loop: start=0, step=1, limit=4
    $region2: #{tpu_custom_call.1} parent=1 // loop_pre_header
      _
    $region3: #{tpu_custom_call.1} parent=1 // loop_header
      %s17 = sphi 0, %s21
      %p18 = scmp.ge.s32.totalorder %s17, 4
      %s24 = sphi 0, %s36
      %s25 = sphi 0, %s32
      %s26 = sphi 0, %s24
      %s27 = sphi 0, %s25
      %s28 = sphi 0, %s26
      %s29 = sphi 0, %s27
      %s41 = sphi 0, %s43
      %s44 = sphi 0, %s41
      %s45 = sphi 0, %s44
      %s61 = sphi 0, %s45
      %s69 = sphi 0, %s71
      %s72 = sphi 0, %s69
      %s73 = sphi 0, %s72
      %s89 = sphi 0, %s73
      %s97 = sphi 0, %s99
      %s100 = sphi 0, %s97
      %s101 = sphi 0, %s100
      %s117 = sphi 0, %s101
    $region4: #{tpu_custom_call.1} parent=1 // loop_header_branch
      %20 = sbr.rel (%p18) target = $region8
    $region5: #{tpu_custom_call.1} parent=1 // loop_body
      %s22 = ssub.s32 %s17, 1
      %s23 = ssub.s32 %s17, 2
      %s30 = sadd.s32 1, %s25
      %p31 = scmp.ge.s32.totalorder %s30, 1
      %s32 = scalar_select %p31, 0, %s30
      %s33 = sadd.s32 1, %s24
      %s34 = scalar_select %p31, %s33, %s24
      %p35 = scmp.ge.s32.totalorder %s34, 2
      %s36 = scalar_select %p35, 0, %s34
      %s37 = ssub.s32 %s24, %s36
      %s38 = ssub.s32 %s25, %s32
      %s39 = sor.u32 %s37, %s38
      %p40 = scmp.eq.s32.totalorder %s39, 0
      %s42 = sadd.s32 %s41, 1
      %s43 = scalar_select %p40, %s41, %s42
      %p46 = pneg %p40
      %p47 = scmp.eq.s32.totalorder %s17, 1
      %p48 = por %p46, %p47
      %p49 = scmp.ne.s32.totalorder %s41, %s44
      %p50 = scmp.eq.s32.totalorder %s17, 0
      %p51 = por %p49, %p50
      %p52 = scmp.ne.s32.totalorder %s41, %s44
      %p53 = scmp.eq.s32.totalorder %s22, 1
      %p54 = por %p52, %p53
      %p55 = scmp.ne.s32.totalorder %s44, %s45
      %p56 = scmp.eq.s32.totalorder %s22, 0
      %p57 = por %p55, %p56
      %p58 = scmp.ne.s32.totalorder %s44, %s45
      %p59 = scmp.eq.s32.totalorder %s23, 1
      %p60 = por %p58, %p59
      %p62 = scmp.ne.s32.totalorder %s45, %s61
      %p63 = scmp.eq.s32.totalorder %s23, 0
      %p64 = por %p62, %p63
      %s65 = ssub.s32 %s24, %s36
      %s66 = ssub.s32 %s25, %s32
      %s67 = sor.u32 %s65, %s66
      %p68 = scmp.eq.s32.totalorder %s67, 0
      %s70 = sadd.s32 %s69, 1
      %s71 = scalar_select %p68, %s69, %s70
      %p74 = pneg %p68
      %p75 = scmp.eq.s32.totalorder %s17, 1
      %p76 = por %p74, %p75
      %p77 = scmp.ne.s32.totalorder %s69, %s72
      %p78 = scmp.eq.s32.totalorder %s17, 0
      %p79 = por %p77, %p78
      %p80 = scmp.ne.s32.totalorder %s69, %s72
      %p81 = scmp.eq.s32.totalorder %s22, 1
      %p82 = por %p80, %p81
      %p83 = scmp.ne.s32.totalorder %s72, %s73
      %p84 = scmp.eq.s32.totalorder %s22, 0
      %p85 = por %p83, %p84
      %p86 = scmp.ne.s32.totalorder %s72, %s73
      %p87 = scmp.eq.s32.totalorder %s23, 1
      %p88 = por %p86, %p87
      %p90 = scmp.ne.s32.totalorder %s73, %s89
      %p91 = scmp.eq.s32.totalorder %s23, 0
      %p92 = por %p90, %p91
      %s93 = ssub.s32 %s24, %s36
      %s94 = ssub.s32 %s25, %s32
      %s95 = sor.u32 %s93, %s94
      %p96 = scmp.eq.s32.totalorder %s95, 0
      %s98 = sadd.s32 %s97, 1
      %s99 = scalar_select %p96, %s97, %s98
      %p102 = pneg %p96
      %p103 = scmp.eq.s32.totalorder %s17, 1
      %p104 = por %p102, %p103
      %p105 = scmp.ne.s32.totalorder %s97, %s100
      %p106 = scmp.eq.s32.totalorder %s17, 0
      %p107 = por %p105, %p106
      %p108 = scmp.ne.s32.totalorder %s97, %s100
      %p109 = scmp.eq.s32.totalorder %s22, 1
      %p110 = por %p108, %p109
      %p111 = scmp.ne.s32.totalorder %s100, %s101
      %p112 = scmp.eq.s32.totalorder %s22, 0
      %p113 = por %p111, %p112
      %p114 = scmp.ne.s32.totalorder %s100, %s101
      %p115 = scmp.eq.s32.totalorder %s23, 1
      %p116 = por %p114, %p115
      %p118 = scmp.ne.s32.totalorder %s101, %s117
      %p119 = scmp.eq.s32.totalorder %s23, 0
      %p120 = por %p118, %p119
      %p121 = scmp.le.s32.totalorder 1, %s17
      %p122 = scmp.lt.s32.totalorder %s17, 3
      %p123 = pnand %p121, %p122
      %p124 = pneg %p123
      // Predicated region
      $region9: #{tpu_custom_call.1} parent=5 // pred_check
        _
      $region10: #{tpu_custom_call.1} parent=5 // pred_check_branch
        %126 = sbr.rel (%p123) target = $region12
      $region11: #{tpu_custom_call.1} parent=5 // pred_region
        %s127 = ssub.s32 %s17, 1
      $region12: #{tpu_custom_call.1} parent=5 // pred_fallthru
        _
      %p128 = scmp.lt.s32.totalorder %s17, 2
      // Predicated region
      $region13: #{tpu_custom_call.1} parent=5 // pred_check
        %p129 = pneg %p128
      $region14: #{tpu_custom_call.1} parent=5 // pred_check_branch
        %131 = sbr.rel (%p129) target = $region16
      $region15: #{tpu_custom_call.1} parent=5 // pred_region
        // Predicated region
        $region17: #{tpu_custom_call.1} parent=15 // pred_check
          %p132 = pneg %p51
        $region18: #{tpu_custom_call.1} parent=15 // pred_check_branch
          %134 = sbr.rel (%p132) target = $region20
        $region19: #{tpu_custom_call.1} parent=15 // pred_region
          %s135 = sand.u32 %s41, 1
          %s136 = scalar_lea.sflag [#allocation3], %s135
          %s137 = sand.u32 %s41, 1
          %s138 = smul.addr %s137, 64
          %s139 = scalar_lea.vmem [#allocation2], %s138
          %s140 = smul.u32 4, %s25
          %s142 = ssub.s32 1024, 1024
          %143 = vsyncadd %s136, %s142
          %s144 = smul.addr %s140, 2
          %s145 = smul.addr %s24, 8
          %s146 = sadd.s32 %s144, %s145
          %s147 = smul.addr %s146, 128
          %s148 = scalar_lea.hbm %s0, %s147
          %s149 = sshll.u32 %s139, 4
          %s150 = int_to_ptr.vmem [resolvable:$true] %s149
          %155 = dma.hbm_to_vmem [thread:$0]  %s148, 1024, %s150, %s136, 128, 128, 8
        $region20: #{tpu_custom_call.1} parent=15 // pred_fallthru
          _
        // Predicated region
        $region21: #{tpu_custom_call.1} parent=15 // pred_check
          %p156 = pneg %p79
        $region22: #{tpu_custom_call.1} parent=15 // pred_check_branch
          %158 = sbr.rel (%p156) target = $region24
        $region23: #{tpu_custom_call.1} parent=15 // pred_region
          %s159 = sand.u32 %s69, 1
          %s160 = scalar_lea.sflag [#allocation6], %s159
          %s161 = sand.u32 %s69, 1
          %s162 = smul.addr %s161, 576
          %s163 = scalar_lea.vmem [#allocation5], %s162
          %s164 = smul.u32 4, %s25
          %s166 = ssub.s32 9216, 9216
          %167 = vsyncadd %s160, %s166
          %s168 = smul.addr %s164, 18
          %s169 = smul.addr %s24, 72
          %s170 = sadd.s32 %s168, %s169
          %s171 = smul.addr %s170, 128
          %s172 = scalar_lea.hbm %s1, %s171
          %s173 = sshll.u32 %s163, 4
          %s174 = int_to_ptr.vmem [resolvable:$true] %s173
          %179 = dma.hbm_to_vmem [thread:$0]  %s172, 9216, %s174, %s160, 128, 128, 8
        $region24: #{tpu_custom_call.1} parent=15 // pred_fallthru
          _
      $region16: #{tpu_custom_call.1} parent=5 // pred_fallthru
        _
      %p180 = scmp.le.s32.totalorder 1, %s17
      %p181 = scmp.lt.s32.totalorder %s17, 3
      %p182 = pnand %p180, %p181
      %p183 = pneg %p182
      // Predicated region
      $region25: #{tpu_custom_call.1} parent=5 // pred_check
        _
      $region26: #{tpu_custom_call.1} parent=5 // pred_check_branch
        %185 = sbr.rel (%p182) target = $region28
      $region27: #{tpu_custom_call.1} parent=5 // pred_region
        %s186 = ssub.s32 %s17, 1
        %s187 = sand.u32 %s44, 1
        %s188 = scalar_lea.sflag [#allocation3], %s187
        %s189 = sand.u32 %s44, 1
        %s190 = smul.addr %s189, 64
        %s191 = scalar_lea.vmem [#allocation2], %s190
        // Predicated region
        $region29: #{tpu_custom_call.1} parent=27 // pred_check
          %p192 = pneg %p57
        $region30: #{tpu_custom_call.1} parent=27 // pred_check_branch
          %194 = sbr.rel (%p192) target = $region32
        $region31: #{tpu_custom_call.1} parent=27 // pred_region
          %195 = dma.done %s188, 1024
        $region32: #{tpu_custom_call.1} parent=27 // pred_fallthru
          _
        %s196 = sand.u32 %s72, 1
        %s197 = scalar_lea.sflag [#allocation6], %s196
        %s198 = sand.u32 %s72, 1
        %s199 = smul.addr %s198, 576
        %s200 = scalar_lea.vmem [#allocation5], %s199
        // Predicated region
        $region33: #{tpu_custom_call.1} parent=27 // pred_check
          %p201 = pneg %p85
        $region34: #{tpu_custom_call.1} parent=27 // pred_check_branch
          %203 = sbr.rel (%p201) target = $region36
        $region35: #{tpu_custom_call.1} parent=27 // pred_region
          %204 = dma.done %s197, 9216
        $region36: #{tpu_custom_call.1} parent=27 // pred_fallthru
          _
        %s205 = sand.u32 %s44, 1
        %s206 = scalar_lea.sflag [#allocation3], %s205
        %s207 = sand.u32 %s44, 1
        %s208 = smul.addr %s207, 64
        %s209 = scalar_lea.vmem [#allocation2], %s208
        %p210 = pneg %p57
        %p211 = pneg %p54
        %s212 = sand.u32 %s72, 1
        %s213 = scalar_lea.sflag [#allocation6], %s212
        %s214 = sand.u32 %s72, 1
        %s215 = smul.addr %s214, 576
        %s216 = scalar_lea.vmem [#allocation5], %s215
        %p217 = pneg %p85
        %p218 = pneg %p82
        %p219 = pneg %p113
        %p220 = pneg %p110
        %s221 = sand.u32 %s100, 1
        %s222 = scalar_lea.sflag [#allocation4], %s221
        %s223 = sand.u32 %s100, 1
        %s224 = smul.addr %s223, 64
        %s225 = scalar_lea.vmem [#allocation7], %s224
        %s226 = smul.u32 4, %s27
        %s227 = smul.u32 4, %s27
        %s228 = smul.u32 4, %s27
        %v229 = vld [vmem:[%s191] sm:$0xff]
        %v230 = vld [vmem:[%s191 + $0x8] sm:$0xff]
        %v231 = vld [vmem:[%s191 + $0x10] sm:$0xff]
        %v232 = vld [vmem:[%s191 + $0x18] sm:$0xff]
        %v233 = vld [vmem:[%s191 + $0x20] sm:$0xff]
        %v234 = vld [vmem:[%s191 + $0x28] sm:$0xff]
        %v235 = vld [vmem:[%s191 + $0x30] sm:$0xff]
        %v236 = vld [vmem:[%s191 + $0x38] sm:$0xff]
        %v237 = vlaneseq
        %v238 = vand.u32 %v237, 127
        %v239 = vlaneseq
        %v240 = vshrl.u32 %v239, 7
        %v241 = vadd.s32 %v240, 8
        %vm242 = vcmp.ge.s32.totalorder %v238, 1
        %v243 = vsel %vm242, 1, 0
        %v244 = vcvt.s32.f32 %v243
        %vm245 = vcmp.le.s32.totalorder %v238, 126
        %v246 = vsel %vm245, 1, 0
        %v247 = vcvt.s32.f32 %v246
        %vm248 = vcmp.ge.s32.totalorder %v240, 1
        %vm249 = vcmp.ge.s32.totalorder %v241, 1
        %v250 = vsel %vm248, 1, 0
        %v251 = vsel %vm249, 1, 0
        %v252 = vcvt.s32.f32 %v250
        %v253 = vcvt.s32.f32 %v251
        %vm254 = vcmp.le.s32.totalorder %v240, 14
        %vm255 = vcmp.le.s32.totalorder %v241, 14
        %v256 = vsel %vm254, 1, 0
        %v257 = vsel %vm255, 1, 0
        %v258 = vcvt.s32.f32 %v256
        %v259 = vcvt.s32.f32 %v257
        %v260 = vrot.slane %v229, 7
        %v261 = vrot.slane %v231, 7
        %v262 = vrot.slane %v233, 7
        %v263 = vrot.slane %v235, 7
        %v264 = vrot.slane %v230, 7
        %v265 = vrot.slane %v232, 7
        %v266 = vrot.slane %v234, 7
        %v267 = vrot.slane %v236, 7
        %vm268 = vcmp.lt.s32.totalorder %v240, 1
        %v269 = vsel %vm268, %v260, %v264
        %v270 = vsel %vm268, %v261, %v265
        %v271 = vsel %vm268, %v262, %v266
        %v272 = vsel %vm268, %v263, %v267
        %v273 = vsel %vm268, %v264, %v260
        %v274 = vsel %vm268, %v265, %v261
        %v275 = vsel %vm268, %v266, %v262
        %v276 = vsel %vm268, %v267, %v263
        %v277 = vmul.f32 %v273, %v252
        %v278 = vmul.f32 %v269, %v253
        %v279 = vmul.f32 %v274, %v252
        %v280 = vmul.f32 %v270, %v253
        %v281 = vmul.f32 %v275, %v252
        %v282 = vmul.f32 %v271, %v253
        %v283 = vmul.f32 %v276, %v252
        %v284 = vmul.f32 %v272, %v253
        %285 = vrot.lane.b32.xlu0 %v277, 1
        %v286 = vpop.permute.xlu0 %285
        %287 = vrot.lane.b32.xlu0 %v278, 1
        %v288 = vpop.permute.xlu0 %287
        %289 = vrot.lane.b32.xlu0 %v279, 1
        %v290 = vpop.permute.xlu0 %289
        %291 = vrot.lane.b32.xlu0 %v280, 1
        %v292 = vpop.permute.xlu0 %291
        %293 = vrot.lane.b32.xlu0 %v281, 1
        %v294 = vpop.permute.xlu0 %293
        %295 = vrot.lane.b32.xlu0 %v282, 1
        %v296 = vpop.permute.xlu0 %295
        %297 = vrot.lane.b32.xlu0 %v283, 1
        %v298 = vpop.permute.xlu0 %297
        %299 = vrot.lane.b32.xlu0 %v284, 1
        %v300 = vpop.permute.xlu0 %299
        %v301 = vmul.f32 %v286, %v244
        %v302 = vmul.f32 %v288, %v244
        %v303 = vmul.f32 %v290, %v244
        %v304 = vmul.f32 %v292, %v244
        %v305 = vmul.f32 %v294, %v244
        %v306 = vmul.f32 %v296, %v244
        %v307 = vmul.f32 %v298, %v244
        %v308 = vmul.f32 %v300, %v244
        %309 = vrot.lane.b32.xlu0 %v277, 127
        %v310 = vpop.permute.xlu0 %309
        %311 = vrot.lane.b32.xlu0 %v278, 127
        %v312 = vpop.permute.xlu0 %311
        %313 = vrot.lane.b32.xlu0 %v279, 127
        %v314 = vpop.permute.xlu0 %313
        %315 = vrot.lane.b32.xlu0 %v280, 127
        %v316 = vpop.permute.xlu0 %315
        %317 = vrot.lane.b32.xlu0 %v281, 127
        %v318 = vpop.permute.xlu0 %317
        %319 = vrot.lane.b32.xlu0 %v282, 127
        %v320 = vpop.permute.xlu0 %319
        %321 = vrot.lane.b32.xlu0 %v283, 127
        %v322 = vpop.permute.xlu0 %321
        %323 = vrot.lane.b32.xlu0 %v284, 127
        %v324 = vpop.permute.xlu0 %323
        %v325 = vmul.f32 %v310, %v247
        %v326 = vmul.f32 %v312, %v247
        %v327 = vmul.f32 %v314, %v247
        %v328 = vmul.f32 %v316, %v247
        %v329 = vmul.f32 %v318, %v247
        %v330 = vmul.f32 %v320, %v247
        %v331 = vmul.f32 %v322, %v247
        %v332 = vmul.f32 %v324, %v247
        %v333 = vld [vmem:[%s200] sm:$0xff]
        %v334 = vld [vmem:[%s200 + $0x8] sm:$0xff]
        %v335 = vld [vmem:[%s200 + $0x90] sm:$0xff]
        %v336 = vld [vmem:[%s200 + $0x98] sm:$0xff]
        %v337 = vld [vmem:[%s200 + $0x120] sm:$0xff]
        %v338 = vld [vmem:[%s200 + $0x128] sm:$0xff]
        %v339 = vld [vmem:[%s200 + $0x1b0] sm:$0xff]
        %v340 = vld [vmem:[%s200 + $0x1b8] sm:$0xff]
        %v341 = vmul.f32 %v301, %v333
        %v342 = vmul.f32 %v302, %v334
        %v343 = vmul.f32 %v303, %v335
        %v344 = vmul.f32 %v304, %v336
        %v345 = vmul.f32 %v305, %v337
        %v346 = vmul.f32 %v306, %v338
        %v347 = vmul.f32 %v307, %v339
        %v348 = vmul.f32 %v308, %v340
        %s349 = scalar_lea.vmem %s200, 16 [#allocation5]
        %v350 = vld [vmem:[%s349] sm:$0xff]
        %v351 = vld [vmem:[%s349 + $0x8] sm:$0xff]
        %v352 = vld [vmem:[%s349 + $0x90] sm:$0xff]
        %v353 = vld [vmem:[%s349 + $0x98] sm:$0xff]
        %v354 = vld [vmem:[%s349 + $0x120] sm:$0xff]
        %v355 = vld [vmem:[%s349 + $0x128] sm:$0xff]
        %v356 = vld [vmem:[%s349 + $0x1b0] sm:$0xff]
        %v357 = vld [vmem:[%s349 + $0x1b8] sm:$0xff]
        %v358 = vmul.f32 %v277, %v350
        %v359 = vmul.f32 %v278, %v351
        %v360 = vmul.f32 %v279, %v352
        %v361 = vmul.f32 %v280, %v353
        %v362 = vmul.f32 %v281, %v354
        %v363 = vmul.f32 %v282, %v355
        %v364 = vmul.f32 %v283, %v356
        %v365 = vmul.f32 %v284, %v357
        %v366 = vadd.f32 %v341, %v358
        %v367 = vadd.f32 %v342, %v359
        %v368 = vadd.f32 %v343, %v360
        %v369 = vadd.f32 %v344, %v361
        %v370 = vadd.f32 %v345, %v362
        %v371 = vadd.f32 %v346, %v363
        %v372 = vadd.f32 %v347, %v364
        %v373 = vadd.f32 %v348, %v365
        %s374 = scalar_lea.vmem %s200, 32 [#allocation5]
        %v375 = vld [vmem:[%s374] sm:$0xff]
        %v376 = vld [vmem:[%s374 + $0x8] sm:$0xff]
        %v377 = vld [vmem:[%s374 + $0x90] sm:$0xff]
        %v378 = vld [vmem:[%s374 + $0x98] sm:$0xff]
        %v379 = vld [vmem:[%s374 + $0x120] sm:$0xff]
        %v380 = vld [vmem:[%s374 + $0x128] sm:$0xff]
        %v381 = vld [vmem:[%s374 + $0x1b0] sm:$0xff]
        %v382 = vld [vmem:[%s374 + $0x1b8] sm:$0xff]
        %v383 = vmul.f32 %v325, %v375
        %v384 = vmul.f32 %v326, %v376
        %v385 = vmul.f32 %v327, %v377
        %v386 = vmul.f32 %v328, %v378
        %v387 = vmul.f32 %v329, %v379
        %v388 = vmul.f32 %v330, %v380
        %v389 = vmul.f32 %v331, %v381
        %v390 = vmul.f32 %v332, %v382
        %v391 = vadd.f32 %v366, %v383
        %v392 = vadd.f32 %v367, %v384
        %v393 = vadd.f32 %v368, %v385
        %v394 = vadd.f32 %v369, %v386
        %v395 = vadd.f32 %v370, %v387
        %v396 = vadd.f32 %v371, %v388
        %v397 = vadd.f32 %v372, %v389
        %v398 = vadd.f32 %v373, %v390
        %399 = vrot.lane.b32.xlu0 %v229, 1
        %v400 = vpop.permute.xlu0 %399
        %401 = vrot.lane.b32.xlu0 %v230, 1
        %v402 = vpop.permute.xlu0 %401
        %403 = vrot.lane.b32.xlu0 %v231, 1
        %v404 = vpop.permute.xlu0 %403
        %405 = vrot.lane.b32.xlu0 %v232, 1
        %v406 = vpop.permute.xlu0 %405
        %407 = vrot.lane.b32.xlu0 %v233, 1
        %v408 = vpop.permute.xlu0 %407
        %409 = vrot.lane.b32.xlu0 %v234, 1
        %v410 = vpop.permute.xlu0 %409
        %411 = vrot.lane.b32.xlu0 %v235, 1
        %v412 = vpop.permute.xlu0 %411
        %413 = vrot.lane.b32.xlu0 %v236, 1
        %v414 = vpop.permute.xlu0 %413
        %v415 = vmul.f32 %v400, %v244
        %v416 = vmul.f32 %v402, %v244
        %v417 = vmul.f32 %v404, %v244
        %v418 = vmul.f32 %v406, %v244
        %v419 = vmul.f32 %v408, %v244
        %v420 = vmul.f32 %v410, %v244
        %v421 = vmul.f32 %v412, %v244
        %v422 = vmul.f32 %v414, %v244
        %423 = vrot.lane.b32.xlu0 %v229, 127
        %v424 = vpop.permute.xlu0 %423
        %425 = vrot.lane.b32.xlu0 %v230, 127
        %v426 = vpop.permute.xlu0 %425
        %427 = vrot.lane.b32.xlu0 %v231, 127
        %v428 = vpop.permute.xlu0 %427
        %429 = vrot.lane.b32.xlu0 %v232, 127
        %v430 = vpop.permute.xlu0 %429
        %431 = vrot.lane.b32.xlu0 %v233, 127
        %v432 = vpop.permute.xlu0 %431
        %433 = vrot.lane.b32.xlu0 %v234, 127
        %v434 = vpop.permute.xlu0 %433
        %435 = vrot.lane.b32.xlu0 %v235, 127
        %v436 = vpop.permute.xlu0 %435
        %437 = vrot.lane.b32.xlu0 %v236, 127
        %v438 = vpop.permute.xlu0 %437
        %v439 = vmul.f32 %v424, %v247
        %v440 = vmul.f32 %v426, %v247
        %v441 = vmul.f32 %v428, %v247
        %v442 = vmul.f32 %v430, %v247
        %v443 = vmul.f32 %v432, %v247
        %v444 = vmul.f32 %v434, %v247
        %v445 = vmul.f32 %v436, %v247
        %v446 = vmul.f32 %v438, %v247
        %s447 = scalar_lea.vmem %s200, 48 [#allocation5]
        %v448 = vld [vmem:[%s447] sm:$0xff]
        %v449 = vld [vmem:[%s447 + $0x8] sm:$0xff]
        %v450 = vld [vmem:[%s447 + $0x90] sm:$0xff]
        %v451 = vld [vmem:[%s447 + $0x98] sm:$0xff]
        %v452 = vld [vmem:[%s447 + $0x120] sm:$0xff]
        %v453 = vld [vmem:[%s447 + $0x128] sm:$0xff]
        %v454 = vld [vmem:[%s447 + $0x1b0] sm:$0xff]
        %v455 = vld [vmem:[%s447 + $0x1b8] sm:$0xff]
        %v456 = vmul.f32 %v415, %v448
        %v457 = vmul.f32 %v416, %v449
        %v458 = vmul.f32 %v417, %v450
        %v459 = vmul.f32 %v418, %v451
        %v460 = vmul.f32 %v419, %v452
        %v461 = vmul.f32 %v420, %v453
        %v462 = vmul.f32 %v421, %v454
        %v463 = vmul.f32 %v422, %v455
        %v464 = vadd.f32 %v391, %v456
        %v465 = vadd.f32 %v392, %v457
        %v466 = vadd.f32 %v393, %v458
        %v467 = vadd.f32 %v394, %v459
        %v468 = vadd.f32 %v395, %v460
        %v469 = vadd.f32 %v396, %v461
        %v470 = vadd.f32 %v397, %v462
        %v471 = vadd.f32 %v398, %v463
        %s472 = scalar_lea.vmem %s200, 64 [#allocation5]
        %v473 = vld [vmem:[%s472] sm:$0xff]
        %v474 = vld [vmem:[%s472 + $0x8] sm:$0xff]
        %v475 = vld [vmem:[%s472 + $0x90] sm:$0xff]
        %v476 = vld [vmem:[%s472 + $0x98] sm:$0xff]
        %v477 = vld [vmem:[%s472 + $0x120] sm:$0xff]
        %v478 = vld [vmem:[%s472 + $0x128] sm:$0xff]
        %v479 = vld [vmem:[%s472 + $0x1b0] sm:$0xff]
        %v480 = vld [vmem:[%s472 + $0x1b8] sm:$0xff]
        %v481 = vmul.f32 %v229, %v473
        %v482 = vmul.f32 %v230, %v474
        %v483 = vmul.f32 %v231, %v475
        %v484 = vmul.f32 %v232, %v476
        %v485 = vmul.f32 %v233, %v477
        %v486 = vmul.f32 %v234, %v478
        %v487 = vmul.f32 %v235, %v479
        %v488 = vmul.f32 %v236, %v480
        %v489 = vadd.f32 %v464, %v481
        %v490 = vadd.f32 %v465, %v482
        %v491 = vadd.f32 %v466, %v483
        %v492 = vadd.f32 %v467, %v484
        %v493 = vadd.f32 %v468, %v485
        %v494 = vadd.f32 %v469, %v486
        %v495 = vadd.f32 %v470, %v487
        %v496 = vadd.f32 %v471, %v488
        %s497 = scalar_lea.vmem %s200, 80 [#allocation5]
        %v498 = vld [vmem:[%s497] sm:$0xff]
        %v499 = vld [vmem:[%s497 + $0x8] sm:$0xff]
        %v500 = vld [vmem:[%s497 + $0x90] sm:$0xff]
        %v501 = vld [vmem:[%s497 + $0x98] sm:$0xff]
        %v502 = vld [vmem:[%s497 + $0x120] sm:$0xff]
        %v503 = vld [vmem:[%s497 + $0x128] sm:$0xff]
        %v504 = vld [vmem:[%s497 + $0x1b0] sm:$0xff]
        %v505 = vld [vmem:[%s497 + $0x1b8] sm:$0xff]
        %v506 = vmul.f32 %v439, %v498
        %v507 = vmul.f32 %v440, %v499
        %v508 = vmul.f32 %v441, %v500
        %v509 = vmul.f32 %v442, %v501
        %v510 = vmul.f32 %v443, %v502
        %v511 = vmul.f32 %v444, %v503
        %v512 = vmul.f32 %v445, %v504
        %v513 = vmul.f32 %v446, %v505
        %v514 = vadd.f32 %v489, %v506
        %v515 = vadd.f32 %v490, %v507
        %v516 = vadd.f32 %v491, %v508
        %v517 = vadd.f32 %v492, %v509
        %v518 = vadd.f32 %v493, %v510
        %v519 = vadd.f32 %v494, %v511
        %v520 = vadd.f32 %v495, %v512
        %v521 = vadd.f32 %v496, %v513
        %v522 = vrot.slane %v229, 1
        %v523 = vrot.slane %v231, 1
        %v524 = vrot.slane %v233, 1
        %v525 = vrot.slane %v235, 1
        %v526 = vrot.slane %v230, 1
        %v527 = vrot.slane %v232, 1
        %v528 = vrot.slane %v234, 1
        %v529 = vrot.slane %v236, 1
        %vm530 = vcmp.lt.s32.totalorder %v240, 7
        %v531 = vsel %vm530, %v522, %v526
        %v532 = vsel %vm530, %v523, %v527
        %v533 = vsel %vm530, %v524, %v528
        %v534 = vsel %vm530, %v525, %v529
        %v535 = vsel %vm530, %v526, %v522
        %v536 = vsel %vm530, %v527, %v523
        %v537 = vsel %vm530, %v528, %v524
        %v538 = vsel %vm530, %v529, %v525
        %v539 = vmul.f32 %v531, %v258
        %v540 = vmul.f32 %v535, %v259
        %v541 = vmul.f32 %v532, %v258
        %v542 = vmul.f32 %v536, %v259
        %v543 = vmul.f32 %v533, %v258
        %v544 = vmul.f32 %v537, %v259
        %v545 = vmul.f32 %v534, %v258
        %v546 = vmul.f32 %v538, %v259
        %547 = vrot.lane.b32.xlu0 %v539, 1
        %v548 = vpop.permute.xlu0 %547
        %549 = vrot.lane.b32.xlu0 %v540, 1
        %v550 = vpop.permute.xlu0 %549
        %551 = vrot.lane.b32.xlu0 %v541, 1
        %v552 = vpop.permute.xlu0 %551
        %553 = vrot.lane.b32.xlu0 %v542, 1
        %v554 = vpop.permute.xlu0 %553
        %555 = vrot.lane.b32.xlu0 %v543, 1
        %v556 = vpop.permute.xlu0 %555
        %557 = vrot.lane.b32.xlu0 %v544, 1
        %v558 = vpop.permute.xlu0 %557
        %559 = vrot.lane.b32.xlu0 %v545, 1
        %v560 = vpop.permute.xlu0 %559
        %561 = vrot.lane.b32.xlu0 %v546, 1
        %v562 = vpop.permute.xlu0 %561
        %v563 = vmul.f32 %v548, %v244
        %v564 = vmul.f32 %v550, %v244
        %v565 = vmul.f32 %v552, %v244
        %v566 = vmul.f32 %v554, %v244
        %v567 = vmul.f32 %v556, %v244
        %v568 = vmul.f32 %v558, %v244
        %v569 = vmul.f32 %v560, %v244
        %v570 = vmul.f32 %v562, %v244
        %571 = vrot.lane.b32.xlu0 %v539, 127
        %v572 = vpop.permute.xlu0 %571
        %573 = vrot.lane.b32.xlu0 %v540, 127
        %v574 = vpop.permute.xlu0 %573
        %575 = vrot.lane.b32.xlu0 %v541, 127
        %v576 = vpop.permute.xlu0 %575
        %577 = vrot.lane.b32.xlu0 %v542, 127
        %v578 = vpop.permute.xlu0 %577
        %579 = vrot.lane.b32.xlu0 %v543, 127
        %v580 = vpop.permute.xlu0 %579
        %581 = vrot.lane.b32.xlu0 %v544, 127
        %v582 = vpop.permute.xlu0 %581
        %583 = vrot.lane.b32.xlu0 %v545, 127
        %v584 = vpop.permute.xlu0 %583
        %585 = vrot.lane.b32.xlu0 %v546, 127
        %v586 = vpop.permute.xlu0 %585
        %v587 = vmul.f32 %v572, %v247
        %v588 = vmul.f32 %v574, %v247
        %v589 = vmul.f32 %v576, %v247
        %v590 = vmul.f32 %v578, %v247
        %v591 = vmul.f32 %v580, %v247
        %v592 = vmul.f32 %v582, %v247
        %v593 = vmul.f32 %v584, %v247
        %v594 = vmul.f32 %v586, %v247
        %s595 = scalar_lea.vmem %s200, 96 [#allocation5]
        %v596 = vld [vmem:[%s595] sm:$0xff]
        %v597 = vld [vmem:[%s595 + $0x8] sm:$0xff]
        %v598 = vld [vmem:[%s595 + $0x90] sm:$0xff]
        %v599 = vld [vmem:[%s595 + $0x98] sm:$0xff]
        %v600 = vld [vmem:[%s595 + $0x120] sm:$0xff]
        %v601 = vld [vmem:[%s595 + $0x128] sm:$0xff]
        %v602 = vld [vmem:[%s595 + $0x1b0] sm:$0xff]
        %v603 = vld [vmem:[%s595 + $0x1b8] sm:$0xff]
        %v604 = vmul.f32 %v563, %v596
        %v605 = vmul.f32 %v564, %v597
        %v606 = vmul.f32 %v565, %v598
        %v607 = vmul.f32 %v566, %v599
        %v608 = vmul.f32 %v567, %v600
        %v609 = vmul.f32 %v568, %v601
        %v610 = vmul.f32 %v569, %v602
        %v611 = vmul.f32 %v570, %v603
        %v612 = vadd.f32 %v514, %v604
        %v613 = vadd.f32 %v515, %v605
        %v614 = vadd.f32 %v516, %v606
        %v615 = vadd.f32 %v517, %v607
        %v616 = vadd.f32 %v518, %v608
        %v617 = vadd.f32 %v519, %v609
        %v618 = vadd.f32 %v520, %v610
        %v619 = vadd.f32 %v521, %v611
        %s620 = scalar_lea.vmem %s200, 112 [#allocation5]
        %v621 = vld [vmem:[%s620] sm:$0xff]
        %v622 = vld [vmem:[%s620 + $0x8] sm:$0xff]
        %v623 = vld [vmem:[%s620 + $0x90] sm:$0xff]
        %v624 = vld [vmem:[%s620 + $0x98] sm:$0xff]
        %v625 = vld [vmem:[%s620 + $0x120] sm:$0xff]
        %v626 = vld [vmem:[%s620 + $0x128] sm:$0xff]
        %v627 = vld [vmem:[%s620 + $0x1b0] sm:$0xff]
        %v628 = vld [vmem:[%s620 + $0x1b8] sm:$0xff]
        %v629 = vmul.f32 %v539, %v621
        %v630 = vmul.f32 %v540, %v622
        %v631 = vmul.f32 %v541, %v623
        %v632 = vmul.f32 %v542, %v624
        %v633 = vmul.f32 %v543, %v625
        %v634 = vmul.f32 %v544, %v626
        %v635 = vmul.f32 %v545, %v627
        %v636 = vmul.f32 %v546, %v628
        %v637 = vadd.f32 %v612, %v629
        %v638 = vadd.f32 %v613, %v630
        %v639 = vadd.f32 %v614, %v631
        %v640 = vadd.f32 %v615, %v632
        %v641 = vadd.f32 %v616, %v633
        %v642 = vadd.f32 %v617, %v634
        %v643 = vadd.f32 %v618, %v635
        %v644 = vadd.f32 %v619, %v636
        %s645 = scalar_lea.vmem %s200, 128 [#allocation5]
        %v646 = vld [vmem:[%s645] sm:$0xff]
        %v647 = vld [vmem:[%s645 + $0x8] sm:$0xff]
        %v648 = vld [vmem:[%s645 + $0x90] sm:$0xff]
        %v649 = vld [vmem:[%s645 + $0x98] sm:$0xff]
        %v650 = vld [vmem:[%s645 + $0x120] sm:$0xff]
        %v651 = vld [vmem:[%s645 + $0x128] sm:$0xff]
        %v652 = vld [vmem:[%s645 + $0x1b0] sm:$0xff]
        %v653 = vld [vmem:[%s645 + $0x1b8] sm:$0xff]
        %v654 = vmul.f32 %v587, %v646
        %v655 = vmul.f32 %v588, %v647
        %v656 = vmul.f32 %v589, %v648
        %v657 = vmul.f32 %v590, %v649
        %v658 = vmul.f32 %v591, %v650
        %v659 = vmul.f32 %v592, %v651
        %v660 = vmul.f32 %v593, %v652
        %v661 = vmul.f32 %v594, %v653
        %v662 = vadd.f32 %v637, %v654
        %v663 = vadd.f32 %v638, %v655
        %v664 = vadd.f32 %v639, %v656
        %v665 = vadd.f32 %v640, %v657
        %v666 = vadd.f32 %v641, %v658
        %v667 = vadd.f32 %v642, %v659
        %v668 = vadd.f32 %v643, %v660
        %v669 = vadd.f32 %v644, %v661
        %670 = vst [vmem:[%s225] sm:$0xff] %v662
        %671 = vst [vmem:[%s225 + $0x8] sm:$0xff] %v663
        %672 = vst [vmem:[%s225 + $0x10] sm:$0xff] %v664
        %673 = vst [vmem:[%s225 + $0x18] sm:$0xff] %v665
        %674 = vst [vmem:[%s225 + $0x20] sm:$0xff] %v666
        %675 = vst [vmem:[%s225 + $0x28] sm:$0xff] %v667
        %676 = vst [vmem:[%s225 + $0x30] sm:$0xff] %v668
        %677 = vst [vmem:[%s225 + $0x38] sm:$0xff] %v669
        %s678 = sand.u32 %s100, 1
        %s679 = scalar_lea.sflag [#allocation4], %s678
        %s680 = sand.u32 %s100, 1
        %s681 = smul.addr %s680, 64
        %s682 = scalar_lea.vmem [#allocation7], %s681
        // Predicated region
        $region37: #{tpu_custom_call.1} parent=27 // pred_check
          %p683 = pneg %p110
        $region38: #{tpu_custom_call.1} parent=27 // pred_check_branch
          %685 = sbr.rel (%p683) target = $region40
        $region39: #{tpu_custom_call.1} parent=27 // pred_region
          %s686 = smul.u32 4, %s27
          %s688 = ssub.s32 1024, 1024
          %689 = vsyncadd %s679, %s688
          %s690 = smul.addr %s686, 2
          %s691 = smul.addr %s26, 8
          %s692 = sadd.s32 %s690, %s691
          %s693 = smul.addr %s692, 128
          %s694 = scalar_lea.hbm %s2, %s693
          %s695 = sshll.u32 %s682, 4
          %s696 = int_to_ptr.vmem [resolvable:$true] %s695
          %701 = dma.vmem_to_hbm [thread:$0]  %s696, 1024, %s694, %s679, 128, 128, 8
        $region40: #{tpu_custom_call.1} parent=27 // pred_fallthru
          _
      $region28: #{tpu_custom_call.1} parent=5 // pred_fallthru
        _
      %p702 = scmp.le.s32.totalorder 2, %s17
      // Predicated region
      $region41: #{tpu_custom_call.1} parent=5 // pred_check
        %p703 = pneg %p702
      $region42: #{tpu_custom_call.1} parent=5 // pred_check_branch
        %705 = sbr.rel (%p703) target = $region44
      $region43: #{tpu_custom_call.1} parent=5 // pred_region
        %s706 = ssub.s32 %s17, 2
        // Predicated region
        $region45: #{tpu_custom_call.1} parent=43 // pred_check
          %p707 = pneg %p116
        $region46: #{tpu_custom_call.1} parent=43 // pred_check_branch
          %709 = sbr.rel (%p707) target = $region48
        $region47: #{tpu_custom_call.1} parent=43 // pred_region
          %s710 = sand.u32 %s101, 1
          %s711 = scalar_lea.sflag [#allocation4], %s710
          %s712 = sand.u32 %s101, 1
          %s713 = smul.addr %s712, 64
          %s714 = scalar_lea.vmem [#allocation7], %s713
          %715 = dma.done %s711, 1024
        $region48: #{tpu_custom_call.1} parent=43 // pred_fallthru
          _
      $region44: #{tpu_custom_call.1} parent=5 // pred_fallthru
        _
    $region6: #{tpu_custom_call.1} parent=1 // loop_footer
      %s21 = sadd.s32 1, %s17
    $region7: #{tpu_custom_call.1} parent=1 // loop_footer_branch
      %16 = sbr.rel target = $region3
    $region8: #{tpu_custom_call.1} parent=1 // loop_exit
      _
    %716 = vsyncpa [#allocation3], 1
    %s717 = scalar_lea.sflag [#allocation3], 1
    %718 = vsyncpa %s717, 1
    %719 = vsyncpa [#allocation6], 1
    %s720 = scalar_lea.sflag [#allocation6], 1
    %721 = vsyncpa %s720, 1
    %722 = vsyncpa [#allocation4], 1
    %s723 = scalar_lea.sflag [#allocation4], 1
    %724 = vsyncpa %s723, 1

</llo_original>
